<compile_context>
chip_gen: v6e
topology: v6e:2x2x1
jax: 0.10.0
libtpu: 0.0.40
codegen_flags: <defaults>
</compile_context>

<pallas_src>
import functools

import jax
import jax.numpy as jnp
from jax import lax
from jax.experimental import pallas as pl
from jax.experimental.pallas import tpu as pltpu


def _round_up(x, m):
    return (x + m - 1) // m * m


# dot_general dimension numbers (2-D, no batching)
_NN = (((1,), (0,)), ((), ()))   # standard:        A      @ B
_NT = (((1,), (1,)), ((), ()))   # rhs transposed:  A      @ B^T
_TN = (((0,), (0,)), ((), ()))   # lhs transposed:  A^T    @ B


# ---------------------- kernel 1: node feature projection ---------------------
def _project_kernel(feat_ref, w_ref, alr_ref, fp_ref, elr_ref):
    # (TM, Din) bf16 @ (Din, H*D) bf16 -> f32 accumulate on the MXU.
    fp = jnp.dot(feat_ref[...], w_ref[...], preferred_element_type=jnp.float32)
    fp_ref[...] = fp.astype(fp_ref.dtype)
    # el / er for all heads in a single matmul against the zero-padded,
    # lane-dense (HD, 128) block-diagonal attention operand -> one unmasked store.
    elr_ref[...] = jnp.dot(fp, alr_ref[...],
                           preferred_element_type=jnp.float32).astype(elr_ref.dtype)


def project(feat_bf, w_bf, alr, *, tm):
    n, din = feat_bf.shape
    hd = w_bf.shape[1]
    ap = alr.shape[1]
    flops = 2 * n * din * hd + 2 * n * hd * ap
    bytes_accessed = 2 * (feat_bf.size + w_bf.size + n * hd) + 4 * (alr.size + n * ap)
    return pl.pallas_call(
        _project_kernel,
        out_shape=(jax.ShapeDtypeStruct((n, hd), jnp.bfloat16),
                   jax.ShapeDtypeStruct((n, ap), jnp.float32)),
        grid=(n // tm,),
        in_specs=[pl.BlockSpec((tm, din), lambda i: (i, 0)),
                  pl.BlockSpec((din, hd), lambda i: (0, 0)),
                  pl.BlockSpec((hd, ap), lambda i: (0, 0))],
        out_specs=(pl.BlockSpec((tm, hd), lambda i: (i, 0)),
                   pl.BlockSpec((tm, ap), lambda i: (i, 0))),
        compiler_params=pltpu.CompilerParams(
            dimension_semantics=("parallel",)),
        cost_estimate=pl.CostEstimate(flops=int(flops), transcendentals=0,
                                      bytes_accessed=int(bytes_accessed)),
    )(feat_bf, w_bf, alr)


# ------------- kernel 2: edge softmax + attention-weighted aggregation --------
def _attend_aggregate_kernel(osrc_ref, odst_ref, ee_ref, fp_ref, elT_ref, erT_ref,
                             r_ref, zcap_ref, rst_ref, lsum_ref, p_ref, *, slope):
    k = pl.program_id(0)

    # Outputs with constant index maps are VMEM-resident across the edge axis:
    # accumulate directly into them (no scratch copies).
    @pl.when(k == 0)
    def _init():
        rst_ref[...] = jnp.zeros_like(rst_ref)
        lsum_ref[...] = jnp.zeros_like(lsum_ref)

    osrc = osrc_ref[...]                          # (TE, N)  bf16 one-hot(src)
    odst = odst_ref[...]                          # (TE, N)  bf16 one-hot(dst)
    osrc_f = osrc.astype(jnp.float32)             # exact 0/1; f32 for f32 gathers
    odst_f = odst.astype(jnp.float32)
    r_mat = r_ref[...]                            # (H, H*D) f32 head->lane expand

    # gather el[src], er[dst]; heads on sublanes, edges on lanes: (H, TE) f32
    el_e = lax.dot_general(elT_ref[...], osrc_f, _NT,
                           preferred_element_type=jnp.float32)
    er_e = lax.dot_general(erT_ref[...], odst_f, _NT,
                           preferred_element_type=jnp.float32)
    z = el_e + er_e + ee_ref[...]
    z = jnp.where(z > 0, z, slope * z)            # leaky_relu
    # subtract a per-head upper bound on the logits (softmax-invariant shift,
    # keeps every exp() <= 1 without a per-destination segment max)
    p = jnp.exp(z - zcap_ref[...])                # (H, TE) f32
    p_ref[...] = p

    # per-edge source features and head-wise broadcast of p across the D lanes
    ft_e = jnp.dot(osrc, fp_ref[...],
                   preferred_element_type=jnp.float32)              # (TE, H*D)
    p_x = lax.dot_general(p, r_mat, _TN,
                          preferred_element_type=jnp.float32)       # (TE, H*D)
    msg = (ft_e * p_x).astype(jnp.bfloat16)

    # scatter-add into dst rows == transposed contraction over the edge axis
    rst_ref[...] += lax.dot_general(odst, msg, _TN,
                                    preferred_element_type=jnp.float32)   # (N, H*D)
    lsum_ref[...] += lax.dot_general(p, odst_f, _NN,
                                     preferred_element_type=jnp.float32)  # (H, N)

    @pl.when(k == pl.num_programs(0) - 1)
    def _finalize():
        denom = lax.dot_general(lsum_ref[...], r_mat, _TN,
                                preferred_element_type=jnp.float32)       # (N, H*D)
        rst_ref[...] = rst_ref[...] / jnp.where(denom > 0.0, denom, 1.0)


def attend_aggregate(osrc, odst, ee_t, fp_bf, elT, erT, r_mat, zcap, *, te, slope):
    e_pad, n = osrc.shape
    hd = fp_bf.shape[1]
    h = elT.shape[0]
    kernel = functools.partial(_attend_aggregate_kernel, slope=slope)
    flops = (2 * e_pad * n * (hd + 2 * h)     # ft_e / el / er gathers
             + 2 * e_pad * h * hd             # p head->lane expand
             + 2 * e_pad * n * (hd + h)       # rst / lsum scatter-adds
             + 2 * n * h * hd)                # final denominator expand
    bytes_accessed = (2 * (2 * osrc.size + fp_bf.size)
                      + 4 * (2 * ee_t.size + elT.size + erT.size + r_mat.size
                             + zcap.size + n * hd + h * n))
    return pl.pallas_call(
        kernel,
        out_shape=(jax.ShapeDtypeStruct((n, hd), jnp.float32),     # rst (flat)
                   jax.ShapeDtypeStruct((h, n), jnp.float32),      # softmax denom
                   jax.ShapeDtypeStruct((h, e_pad), jnp.float32)), # per-edge p
        grid=(e_pad // te,),
        in_specs=[pl.BlockSpec((te, n), lambda k: (k, 0)),
                  pl.BlockSpec((te, n), lambda k: (k, 0)),
                  pl.BlockSpec((h, te), lambda k: (0, k)),
                  pl.BlockSpec((n, hd), lambda k: (0, 0)),
                  pl.BlockSpec((h, n), lambda k: (0, 0)),
                  pl.BlockSpec((h, n), lambda k: (0, 0)),
                  pl.BlockSpec((h, hd), lambda k: (0, 0)),
                  pl.BlockSpec((h, 1), lambda k: (0, 0))],
        out_specs=(pl.BlockSpec((n, hd), lambda k: (0, 0)),
                   pl.BlockSpec((h, n), lambda k: (0, 0)),
                   pl.BlockSpec((h, te), lambda k: (0, k))),
        compiler_params=pltpu.CompilerParams(
            dimension_semantics=("arbitrary",)),
        cost_estimate=pl.CostEstimate(flops=int(flops),
                                      transcendentals=int(e_pad * h),
                                      bytes_accessed=int(bytes_accessed)),
    )(osrc, odst, ee_t, fp_bf, elT, erT, r_mat, zcap)


# ------------------------------- forward glue ---------------------------------
def my_gat_conv_forward(feat, src, dst, e_type, params, *,
                        num_nodes, num_heads, out_feats, edge_feats,
                        negative_slope=0.2):
    n, h, d = num_nodes, num_heads, out_feats
    hd = h * d
    e = src.shape[0]
    f32 = jnp.float32

    # ---- unique-e-type edge attention term (only T rows; trivial glue) ----
    fe = (params["edge_embeds"] @ params["w_fce"]).reshape(-1, h, edge_feats)
    ee_types = (fe * params["attn_e"]).sum(-1)                    # (T, H)

    # ---- attention vectors as one lane-dense block-diagonal matmul operand ---
    eye_h = jnp.eye(h, dtype=f32)
    A_l = (params["attn_l"][0][:, :, None] * eye_h[:, None, :]).reshape(hd, h)
    A_r = (params["attn_r"][0][:, :, None] * eye_h[:, None, :]).reshape(hd, h)
    ap = max(128, _round_up(2 * h, 128))
    alr = jnp.zeros((hd, ap), f32).at[:, :h].set(A_l).at[:, h:2 * h].set(A_r)
    r_mat = jnp.repeat(eye_h, d, axis=1)                          # (H, H*D)

    # ---- tile sizes (256-deep contraction matches v6e/v7x MXU; use 128 on v5e)
    n_pad = _round_up(n, 128)
    tm = 256 if n_pad % 256 == 0 else 128
    te = 256
    e_pad = _round_up(e, te)

    feat_p = jnp.pad(feat, ((0, n_pad - n), (0, 0))).astype(jnp.bfloat16)

    # ---- one-hot incidence matrices (vectorized compare; no serial scatter) --
    node_ids = jnp.arange(n_pad, dtype=src.dtype)
    osrc = jnp.pad(src[:, None] == node_ids[None, :],
                   ((0, e_pad - e), (0, 0))).astype(jnp.bfloat16)
    odst = jnp.pad(dst[:, None] == node_ids[None, :],
                   ((0, e_pad - e), (0, 0))).astype(jnp.bfloat16)

    # per-edge edge-type term: heads on sublanes, edges on lanes
    ee_t = jnp.pad(ee_types[e_type].T, ((0, 0), (0, e_pad - e)))  # (H, E_pad)

    # ---- kernel 1: feat @ fc and the per-head attention dots ----
    fp_bf, elr = project(feat_p, params["w_fc"].astype(jnp.bfloat16), alr, tm=tm)
    elT = elr[:, :h].T                                            # (H, N_pad) f32
    erT = elr[:, h:2 * h].T                                       # (H, N_pad) f32

    # per-head constant shift >= max logit (softmax-invariant; avoids overflow).
    # TODO(synk): looser than the reference per-destination segment max; exact
    #             enough unless real logit ranges span ~80+ units.
    zmax = elT.max(axis=1) + erT.max(axis=1) + ee_types.max(axis=0)
    zcap = jnp.where(zmax > 0, zmax, negative_slope * zmax).reshape(h, 1)

    # ---- kernel 2: edge softmax + attention-weighted aggregation ----
    rst_flat, l_sum, p_full = attend_aggregate(
        osrc, odst, ee_t, fp_bf, elT, erT, r_mat, zcap,
        te=te, slope=negative_slope)

    rst = rst_flat[:n].reshape(n, h, d)
    a = (p_full[:, :e] / l_sum[:, dst]).T[:, :, None]             # (E, H, 1)
    return rst, a


# ------------------------------ pure-JAX reference ----------------------------
def reference(feat, src, dst, e_type, params, *, num_nodes, num_heads,
              out_feats, edge_feats, negative_slope=0.2):
    n, h = num_nodes, num_heads
    fp = (feat @ params["w_fc"]).reshape(n, h, out_feats)
    el = (fp * params["attn_l"]).sum(-1)                          # (N, H)
    er = (fp * params["attn_r"]).sum(-1)
    fe = (params["edge_embeds"][e_type] @ params["w_fce"]).reshape(-1, h, edge_feats)
    ee = (fe * params["attn_e"]).sum(-1)                          # (E, H)
    z = el[src] + er[dst] + ee
    z = jnp.where(z > 0, z, negative_slope * z)
    zmax = jax.ops.segment_max(z, dst, num_segments=n)
    zmax = jnp.where(jnp.isfinite(zmax), zmax, 0.0)
    p = jnp.exp(z - zmax[dst])
    l = jax.ops.segment_sum(p, dst, num_segments=n)
    a = p / l[dst]
    rst = jax.ops.segment_sum(fp[src] * a[:, :, None], dst, num_segments=n)
    return rst, a[:, :, None]


if __name__ == "__main__":
    N, E = 64, 256
    IN_FEATS, OUT_FEATS, EDGE_FEATS = 32, 32, 16
    NUM_HEADS, NUM_ETYPES = 4, 5
    NEG_SLOPE = 0.2

    key = jax.random.PRNGKey(0)
    ks = jax.random.split(key, 10)
    src = jax.random.randint(ks[0], (E,), 0, N)
    dst = jax.random.randint(ks[1], (E,), 0, N)
    e_type = jax.random.randint(ks[2], (E,), 0, NUM_ETYPES)
    feat = jax.random.normal(ks[3], (N, IN_FEATS), jnp.float32)

    # deterministic synthetic parameters (not a checkpoint load)
    params = {
        "w_fc": 0.1 * jax.random.normal(ks[4], (IN_FEATS, NUM_HEADS * OUT_FEATS), jnp.float32),
        "w_fce": 0.1 * jax.random.normal(ks[5], (EDGE_FEATS, NUM_HEADS * EDGE_FEATS), jnp.float32),
        "edge_embeds": jax.random.normal(ks[6], (NUM_ETYPES, EDGE_FEATS), jnp.float32),
        "attn_l": 0.1 * jax.random.normal(ks[7], (1, NUM_HEADS, OUT_FEATS), jnp.float32),
        "attn_r": 0.1 * jax.random.normal(ks[8], (1, NUM_HEADS, OUT_FEATS), jnp.float32),
        "attn_e": 0.1 * jax.random.normal(ks[9], (1, NUM_HEADS, EDGE_FEATS), jnp.float32),
    }

    rst, a = my_gat_conv_forward(feat, src, dst, e_type, params,
                                 num_nodes=N, num_heads=NUM_HEADS,
                                 out_feats=OUT_FEATS, edge_feats=EDGE_FEATS,
                                 negative_slope=NEG_SLOPE)
    rst, a = jax.block_until_ready((rst, a))

    rst_ref, a_ref = reference(feat, src, dst, e_type, params,
                               num_nodes=N, num_heads=NUM_HEADS,
                               out_feats=OUT_FEATS, edge_feats=EDGE_FEATS,
                               negative_slope=NEG_SLOPE)

    err_rst = float(jnp.max(jnp.abs(rst - rst_ref)))
    err_a = float(jnp.max(jnp.abs(a - a_ref)))
    assert rst.shape == (N, NUM_HEADS, OUT_FEATS), rst.shape
    assert a.shape == (E, NUM_HEADS, 1), a.shape
    assert err_rst < 5e-2, f"rst max abs err {err_rst}"
    assert err_a < 5e-2, f"a max abs err {err_a}"
    print("KERNEL_OK")
</pallas_src>

<mosaic_0001>
module attributes {stable_mosaic.version = 11 : i64} {
  func.func @_project_kernel(%arg0: i32, %arg1: memref<128x32xbf16, #tpu.memory_space<vmem>>, %arg2: memref<32x128xbf16, #tpu.memory_space<vmem>>, %arg3: memref<128x128xf32, #tpu.memory_space<vmem>>, %arg4: memref<128x128xbf16, #tpu.memory_space<vmem>>, %arg5: memref<128x128xf32, #tpu.memory_space<vmem>>) attributes {dimension_semantics = [#tpu.dimension_semantics<parallel>], iteration_bounds = array<i64: 1>, scalar_prefetch = 0 : i64, scratch_operands = 0 : i64, tpu.core_type = #tpu.core_type<tc>, window_params = [{transform_indices = @transform_0, window_bounds = array<i64: 128, 32>}, {pipeline_mode = #tpu.pipeline_mode<synchronous>, transform_indices = @transform_1, window_bounds = array<i64: 32, 128>}, {pipeline_mode = #tpu.pipeline_mode<synchronous>, transform_indices = @transform_2, window_bounds = array<i64: 128, 128>}, {transform_indices = @transform_3, window_bounds = array<i64: 128, 128>}, {transform_indices = @transform_4, window_bounds = array<i64: 128, 128>}]} {
    %c0 = arith.constant 0 : index
    %c0_0 = arith.constant 0 : index
    %0 = vector.load %arg1[%c0, %c0_0] : memref<128x32xbf16, #tpu.memory_space<vmem>>, vector<128x32xbf16>
    %c0_1 = arith.constant 0 : index
    %c0_2 = arith.constant 0 : index
    %1 = vector.load %arg2[%c0_1, %c0_2] : memref<32x128xbf16, #tpu.memory_space<vmem>>, vector<32x128xbf16>
    %cst = arith.constant dense<0.000000e+00> : vector<128x128xf32>
    %2 = tpu.matmul %0, %1, %cst {dimension_numbers = #tpu.dot_dimension_numbers<[1], [0], [0], [1], [0, 0, 1, 1], [], []>} : vector<128x32xbf16>, vector<32x128xbf16>, vector<128x128xf32> -> vector<128x128xf32>
    %3 = arith.truncf %2 : vector<128x128xf32> to vector<128x128xbf16>
    %c0_3 = arith.constant 0 : index
    %c0_4 = arith.constant 0 : index
    %4 = vector.load %arg4[%c0_3, %c0_4] : memref<128x128xbf16, #tpu.memory_space<vmem>>, vector<128x128xbf16>
    tpu.vector_store %arg4[%c0_3, %c0_4], %3 {strides = array<i32>} : memref<128x128xbf16, #tpu.memory_space<vmem>>, vector<128x128xbf16>,
    %c0_5 = arith.constant 0 : index
    %c0_6 = arith.constant 0 : index
    %5 = vector.load %arg3[%c0_5, %c0_6] : memref<128x128xf32, #tpu.memory_space<vmem>>, vector<128x128xf32>
    %cst_7 = arith.constant dense<0.000000e+00> : vector<128x128xf32>
    %6 = tpu.matmul %2, %5, %cst_7 {dimension_numbers = #tpu.dot_dimension_numbers<[1], [0], [0], [1], [0, 0, 1, 1], [], []>} : vector<128x128xf32>, vector<128x128xf32>, vector<128x128xf32> -> vector<128x128xf32>
    %c0_8 = arith.constant 0 : index
    %c0_9 = arith.constant 0 : index
    %7 = vector.load %arg5[%c0_8, %c0_9] : memref<128x128xf32, #tpu.memory_space<vmem>>, vector<128x128xf32>
    tpu.vector_store %arg5[%c0_8, %c0_9], %6 {strides = array<i32>} : memref<128x128xf32, #tpu.memory_space<vmem>>, vector<128x128xf32>,
    return
  }
  func.func @transform_0(%arg0: i32) -> (i32, i32) {
    %c0_i32 = arith.constant 0 : i32
    %c0_i32_0 = arith.constant 0 : i32
    return %arg0, %c0_i32 : i32, i32
  }
  func.func @transform_1(%arg0: i32) -> (i32, i32) {
    %c0_i32 = arith.constant 0 : i32
    %c0_i32_0 = arith.constant 0 : i32
    %c0_i32_1 = arith.constant 0 : i32
    return %c0_i32, %c0_i32_0 : i32, i32
  }
  func.func @transform_2(%arg0: i32) -> (i32, i32) {
    %c0_i32 = arith.constant 0 : i32
    %c0_i32_0 = arith.constant 0 : i32
    %c0_i32_1 = arith.constant 0 : i32
    return %c0_i32, %c0_i32_0 : i32, i32
  }
  func.func @transform_3(%arg0: i32) -> (i32, i32) {
    %c0_i32 = arith.constant 0 : i32
    %c0_i32_0 = arith.constant 0 : i32
    return %arg0, %c0_i32 : i32, i32
  }
  func.func @transform_4(%arg0: i32) -> (i32, i32) {
    %c0_i32 = arith.constant 0 : i32
    %c0_i32_0 = arith.constant 0 : i32
    return %arg0, %c0_i32 : i32, i32
  }
}

</mosaic_0001>

<llo_original>
// kernel: tpu_custom_call.1
$region0: #{tpu_custom_call.1}
  #allocation0 [shape = 'u32[]', space=smem, size = 0x4, offset = 0x4, fixed_abs, tag = 'smem constant byte address 0x4 - core index']
  #allocation1 [shape = 'u32[144,128]{1,0:T(1,128)}', space=vmem, size = 0x12000, scoped, tag = 'internal scratch']
  %s0 = inlined_call_operand.vmem [shape: bf16[128,32], index: 0, kind: input, shape index: {}]
  %s1 = inlined_call_operand.vmem [shape: bf16[32,128], index: 1, kind: input, shape index: {}]
  %s2 = inlined_call_operand.hbm [shape: f32[128,128], index: 2, kind: input, shape index: {}]
  %s3 = inlined_call_operand.hbm [shape: bf16[128,128], index: 3, kind: output, shape index: {0}]
  %s4 = inlined_call_operand.hbm [shape: f32[128,128], index: 4, kind: output, shape index: {1}]
  %5 = xla_tuple %s3, %s4
  %s6 = sld [smem:[#allocation0]]
  $region34: #{tpu_custom_call.1} parent=0
    _
  %s8 = ssub.s32 1, %s6
  %s9 = scalar_select 0, %s8, %s6
  $region1: #{tpu_custom_call.1} parent=0
    #allocation2 [shape = 'u8[65536]{0}', space=vmem, size = 0x10000, scoped, tag = 'input window, operand 2, single buffered']
    #allocation3 [shape = 's32[1]{0}', space=sflag, size = 0x4, scoped, tag = 'scoped memory for tpu_custom_call.1']
    #allocation4 [shape = 's32[1]{0}', space=sflag, size = 0x4, scoped, tag = 'scoped memory for tpu_custom_call.1']
    #allocation5 [shape = 'u8[32768]{0}', space=vmem, size = 0x8000, scoped, tag = 'output window, operand 0, single buffered']
    #allocation6 [shape = 'u8[65536]{0}', space=vmem, size = 0x10000, scoped, tag = 'output window, operand 1, single buffered']
    #allocation7 [shape = 's32[1]{0}', space=sflag, size = 0x4, scoped, tag = 'scoped memory for tpu_custom_call.1']
    %10 = vsyncpa [#allocation3], 0
    %11 = vsyncpa [#allocation4], 0
    %12 = vsyncpa [#allocation7], 0
    // Predicated region
    $region2: #{tpu_custom_call.1} parent=1 // pred_check
      _
    $region3: #{tpu_custom_call.1} parent=1 // pred_check_branch
      %14 = sbr.rel (0) target = $region5
    $region4: #{tpu_custom_call.1} parent=1 // pred_region
      _
    $region5: #{tpu_custom_call.1} parent=1 // pred_fallthru
      _
    // Predicated region
    $region6: #{tpu_custom_call.1} parent=1 // pred_check
      _
    $region7: #{tpu_custom_call.1} parent=1 // pred_check_branch
      %16 = sbr.rel (0) target = $region9
    $region8: #{tpu_custom_call.1} parent=1 // pred_region
      _
    $region9: #{tpu_custom_call.1} parent=1 // pred_fallthru
      _
    // Predicated region
    $region10: #{tpu_custom_call.1} parent=1 // pred_check
      _
    $region11: #{tpu_custom_call.1} parent=1 // pred_check_branch
      %18 = sbr.rel (0) target = $region13
    $region12: #{tpu_custom_call.1} parent=1 // pred_region
      %s20 = ssub.s32 2048, 2048
      %21 = vsyncadd [#allocation3], %s20
      %s22 = sshll.u32 [#allocation2], 4
      %s23 = int_to_ptr.vmem [resolvable:$true] %s22
      %28 = dma.hbm_to_vmem [thread:$0]  %s2, 2048, %s23, [#allocation3], 128, 128, 8
    $region13: #{tpu_custom_call.1} parent=1 // pred_fallthru
      _
    // Predicated region
    $region14: #{tpu_custom_call.1} parent=1 // pred_check
      _
    $region15: #{tpu_custom_call.1} parent=1 // pred_check_branch
      %30 = sbr.rel (0) target = $region17
    $region16: #{tpu_custom_call.1} parent=1 // pred_region
      %31 = dma.done [#allocation3], 2048
    $region17: #{tpu_custom_call.1} parent=1 // pred_fallthru
      _
    %v33 = vld [vmem:[%s0] sm:$0xf]
    %v34 = vld [vmem:[%s0 + $0x4] sm:$0xf]
    %v35 = vld [vmem:[%s0 + $0x8] sm:$0xf]
    %v36 = vld [vmem:[%s0 + $0xc] sm:$0xf]
    %v37 = vld [vmem:[%s0 + $0x10] sm:$0xf]
    %v38 = vld [vmem:[%s0 + $0x14] sm:$0xf]
    %v39 = vld [vmem:[%s0 + $0x18] sm:$0xf]
    %v40 = vld [vmem:[%s0 + $0x1c] sm:$0xf]
    %v41 = vld [vmem:[%s0 + $0x20] sm:$0xf]
    %v42 = vld [vmem:[%s0 + $0x24] sm:$0xf]
    %v43 = vld [vmem:[%s0 + $0x28] sm:$0xf]
    %v44 = vld [vmem:[%s0 + $0x2c] sm:$0xf]
    %v45 = vld [vmem:[%s0 + $0x30] sm:$0xf]
    %v46 = vld [vmem:[%s0 + $0x34] sm:$0xf]
    %v47 = vld [vmem:[%s0 + $0x38] sm:$0xf]
    %v48 = vld [vmem:[%s0 + $0x3c] sm:$0xf]
    %v49 = vld [vmem:[%s1] sm:$0xf]
    %v50 = vld [vmem:[%s1 + $0x4] sm:$0xf]
    %v51 = vld [vmem:[%s1 + $0x8] sm:$0xf]
    %v52 = vld [vmem:[%s1 + $0xc] sm:$0xf]
    %v69 = vunpack.c.l.b16 %v33
    %v70 = vunpack.c.l.b16 %v34
    %v71 = vunpack.c.l.b16 %v35
    %v72 = vunpack.c.l.b16 %v36
    %v73 = vunpack.c.l.b16 %v37
    %v74 = vunpack.c.l.b16 %v38
    %v75 = vunpack.c.l.b16 %v39
    %v76 = vunpack.c.l.b16 %v40
    %v77 = vunpack.c.l.b16 %v41
    %v78 = vunpack.c.l.b16 %v42
    %v79 = vunpack.c.l.b16 %v43
    %v80 = vunpack.c.l.b16 %v44
    %v81 = vunpack.c.l.b16 %v45
    %v82 = vunpack.c.l.b16 %v46
    %v83 = vunpack.c.l.b16 %v47
    %v84 = vunpack.c.l.b16 %v48
    %v85 = vpack.c.b16 %v70, %v69
    %v86 = vpack.c.b16 %v72, %v71
    %v87 = vpack.c.b16 %v74, %v73
    %v88 = vpack.c.b16 %v76, %v75
    %v89 = vpack.c.b16 %v78, %v77
    %v90 = vpack.c.b16 %v80, %v79
    %v91 = vpack.c.b16 %v82, %v81
    %v92 = vpack.c.b16 %v84, %v83
    %v97 = vunpack.c.l.b16 %v49
    %v98 = vunpack.c.l.b16 %v50
    %v99 = vunpack.c.l.b16 %v51
    %v100 = vunpack.c.l.b16 %v52
    %v101 = vpack.c.b16 %v98, %v97
    %v102 = vpack.c.b16 %v100, %v99
    %vm105 = vcmask 261120
    %v107 = vsel %vm105, %v85, 0
    %v110 = vsel %vm105, %v86, 0
    %v113 = vsel %vm105, %v87, 0
    %v116 = vsel %vm105, %v88, 0
    %v119 = vsel %vm105, %v89, 0
    %v122 = vsel %vm105, %v90, 0
    %v125 = vsel %vm105, %v91, 0
    %v128 = vsel %vm105, %v92, 0
    %130 = vmatprep.subr.bf16.mxu0 0
    %131 = vmatpush1.bf16.msra.mxu0 0
    %132 = vmatprep.subr.bf16.mxu0 0
    %133 = vmatpush1.bf16.msra.mxu0 0
    %134 = vmatprep.subr.bf16.mxu0 0
    %135 = vmatpush1.bf16.msra.mxu0 0
    %136 = vmatprep.subr.bf16.mxu0 0
    %137 = vmatpush1.bf16.msra.mxu0 0
    %138 = vmatprep.subr.bf16.mxu0 0
    %139 = vmatpush1.bf16.msra.mxu0 0
    %140 = vmatprep.subr.bf16.mxu0 0
    %141 = vmatpush1.bf16.msra.mxu0 0
    %142 = vmatprep.subr.bf16.mxu0 0
    %143 = vmatpush1.bf16.msra.mxu0 %v102
    %144 = vmatprep.subr.bf16.mxu0 0
    %145 = vmatpush1.bf16.msra.mxu0 %v101
    %146 = vmatprep.subr.bf16.mxu0 0
    %147 = vmatpush2.bf16.msra.mxu0 0
    %148 = vmatprep.subr.bf16.mxu0 0
    %149 = vmatpush2.bf16.msra.mxu0 0
    %150 = vmatprep.subr.bf16.mxu0 0
    %151 = vmatpush2.bf16.msra.mxu0 0
    %152 = vmatprep.subr.bf16.mxu0 0
    %153 = vmatpush2.bf16.msra.mxu0 0
    %154 = vmatprep.subr.bf16.mxu0 0
    %155 = vmatpush2.bf16.msra.mxu0 0
    %156 = vmatprep.subr.bf16.mxu0 0
    %157 = vmatpush2.bf16.msra.mxu0 0
    %158 = vmatprep.subr.bf16.mxu0 0
    %159 = vmatpush2.bf16.msra.mxu0 0
    %160 = vmatprep.subr.bf16.mxu0 0
    %161 = vmatpush2.bf16.msra.mxu0 0
    %162 = vmatprep.mubr.bf16.mxu0 0
    %163 = vmatmul.mubr.bf16.gmra.mxu0 %v107
    %v164 = vpop.f32.mrf.mxu0
    %v165 = vadd.f32 0.0, %v164
    %v166 = vpop.f32.mrf.mxu0
    %v167 = vpop.f32.mrf.mxu0
    %v168 = vadd.f32 0.0, %v167
    %v169 = vpop.f32.mrf.mxu0
    %170 = vmatprep.mubr.bf16.mxu0 0
    %171 = vmatmul.mubr.bf16.gmra.mxu0 %v110
    %v172 = vpop.f32.mrf.mxu0
    %v173 = vadd.f32 0.0, %v172
    %v174 = vpop.f32.mrf.mxu0
    %v175 = vpop.f32.mrf.mxu0
    %v176 = vadd.f32 0.0, %v175
    %v177 = vpop.f32.mrf.mxu0
    %178 = vmatprep.mubr.bf16.mxu0 0
    %179 = vmatmul.mubr.bf16.gmra.mxu0 %v113
    %v180 = vpop.f32.mrf.mxu0
    %v181 = vadd.f32 0.0, %v180
    %v182 = vpop.f32.mrf.mxu0
    %v183 = vpop.f32.mrf.mxu0
    %v184 = vadd.f32 0.0, %v183
    %v185 = vpop.f32.mrf.mxu0
    %186 = vmatprep.mubr.bf16.mxu0 0
    %187 = vmatmul.mubr.bf16.gmra.mxu0 %v116
    %v188 = vpop.f32.mrf.mxu0
    %v189 = vadd.f32 0.0, %v188
    %v190 = vpop.f32.mrf.mxu0
    %v191 = vpop.f32.mrf.mxu0
    %v192 = vadd.f32 0.0, %v191
    %v193 = vpop.f32.mrf.mxu0
    %194 = vmatprep.mubr.bf16.mxu0 0
    %195 = vmatmul.mubr.bf16.gmra.mxu0 %v119
    %v196 = vpop.f32.mrf.mxu0
    %v197 = vadd.f32 0.0, %v196
    %v198 = vpop.f32.mrf.mxu0
    %v199 = vpop.f32.mrf.mxu0
    %v200 = vadd.f32 0.0, %v199
    %v201 = vpop.f32.mrf.mxu0
    %202 = vmatprep.mubr.bf16.mxu0 0
    %203 = vmatmul.mubr.bf16.gmra.mxu0 %v122
    %v204 = vpop.f32.mrf.mxu0
    %v205 = vadd.f32 0.0, %v204
    %v206 = vpop.f32.mrf.mxu0
    %v207 = vpop.f32.mrf.mxu0
    %v208 = vadd.f32 0.0, %v207
    %v209 = vpop.f32.mrf.mxu0
    %210 = vmatprep.mubr.bf16.mxu0 0
    %211 = vmatmul.mubr.bf16.gmra.mxu0 %v125
    %v212 = vpop.f32.mrf.mxu0
    %v213 = vadd.f32 0.0, %v212
    %v214 = vpop.f32.mrf.mxu0
    %v215 = vpop.f32.mrf.mxu0
    %v216 = vadd.f32 0.0, %v215
    %v217 = vpop.f32.mrf.mxu0
    %218 = vmatprep.mubr.bf16.mxu0 0
    %219 = vmatmul.mubr.bf16.gmra.mxu0 %v128
    %v220 = vpop.f32.mrf.mxu0
    %v221 = vadd.f32 0.0, %v220
    %v222 = vpop.f32.mrf.mxu0
    %v223 = vpop.f32.mrf.mxu0
    %v224 = vadd.f32 0.0, %v223
    %v225 = vpop.f32.mrf.mxu0
    %226 = vdwg.mxu0
    %v227 = vpack.c.bf16 %v168, %v165
    %v228 = vpack.c.bf16 %v176, %v173
    %v229 = vpack.c.bf16 %v184, %v181
    %v230 = vpack.c.bf16 %v192, %v189
    %v231 = vpack.c.bf16 %v200, %v197
    %v232 = vpack.c.bf16 %v208, %v205
    %v233 = vpack.c.bf16 %v216, %v213
    %v234 = vpack.c.bf16 %v224, %v221
    %v243 = vunpack.c.l.b16 %v227
    %v244 = vunpack.c.h.b16 %v227
    %v245 = vunpack.c.l.b16 %v228
    %v246 = vunpack.c.h.b16 %v228
    %v247 = vunpack.c.l.b16 %v229
    %v248 = vunpack.c.h.b16 %v229
    %v249 = vunpack.c.l.b16 %v230
    %v250 = vunpack.c.h.b16 %v230
    %v251 = vunpack.c.l.b16 %v231
    %v252 = vunpack.c.h.b16 %v231
    %v253 = vunpack.c.l.b16 %v232
    %v254 = vunpack.c.h.b16 %v232
    %v255 = vunpack.c.l.b16 %v233
    %v256 = vunpack.c.h.b16 %v233
    %v257 = vunpack.c.l.b16 %v234
    %v258 = vunpack.c.h.b16 %v234
    %v259 = vpack.c.b16 %v243, %v243
    %v260 = vpack.c.b16 %v244, %v244
    %v261 = vpack.c.b16 %v245, %v245
    %v262 = vpack.c.b16 %v246, %v246
    %v263 = vpack.c.b16 %v247, %v247
    %v264 = vpack.c.b16 %v248, %v248
    %v265 = vpack.c.b16 %v249, %v249
    %v266 = vpack.c.b16 %v250, %v250
    %v267 = vpack.c.b16 %v251, %v251
    %v268 = vpack.c.b16 %v252, %v252
    %v269 = vpack.c.b16 %v253, %v253
    %v270 = vpack.c.b16 %v254, %v254
    %v271 = vpack.c.b16 %v255, %v255
    %v272 = vpack.c.b16 %v256, %v256
    %v273 = vpack.c.b16 %v257, %v257
    %v274 = vpack.c.b16 %v258, %v258
    %291 = vst [vmem:[#allocation5] sm:$0xf] %v259
    %292 = vst [vmem:[#allocation5 + $0x4] sm:$0xf] %v260
    %293 = vst [vmem:[#allocation5 + $0x8] sm:$0xf] %v261
    %294 = vst [vmem:[#allocation5 + $0xc] sm:$0xf] %v262
    %295 = vst [vmem:[#allocation5 + $0x10] sm:$0xf] %v263
    %296 = vst [vmem:[#allocation5 + $0x14] sm:$0xf] %v264
    %297 = vst [vmem:[#allocation5 + $0x18] sm:$0xf] %v265
    %298 = vst [vmem:[#allocation5 + $0x1c] sm:$0xf] %v266
    %299 = vst [vmem:[#allocation5 + $0x20] sm:$0xf] %v267
    %300 = vst [vmem:[#allocation5 + $0x24] sm:$0xf] %v268
    %301 = vst [vmem:[#allocation5 + $0x28] sm:$0xf] %v269
    %302 = vst [vmem:[#allocation5 + $0x2c] sm:$0xf] %v270
    %303 = vst [vmem:[#allocation5 + $0x30] sm:$0xf] %v271
    %304 = vst [vmem:[#allocation5 + $0x34] sm:$0xf] %v272
    %305 = vst [vmem:[#allocation5 + $0x38] sm:$0xf] %v273
    %306 = vst [vmem:[#allocation5 + $0x3c] sm:$0xf] %v274
    %v307 = vld [vmem:[#allocation2] sm:$0xff]
    %v308 = vld [vmem:[#allocation2 + $0x8] sm:$0xff]
    %v309 = vld [vmem:[#allocation2 + $0x10] sm:$0xff]
    %v310 = vld [vmem:[#allocation2 + $0x18] sm:$0xff]
    %v311 = vld [vmem:[#allocation2 + $0x20] sm:$0xff]
    %v312 = vld [vmem:[#allocation2 + $0x28] sm:$0xff]
    %v313 = vld [vmem:[#allocation2 + $0x30] sm:$0xff]
    %v314 = vld [vmem:[#allocation2 + $0x38] sm:$0xff]
    %v315 = vld [vmem:[#allocation2 + $0x40] sm:$0xff]
    %v316 = vld [vmem:[#allocation2 + $0x48] sm:$0xff]
    %v317 = vld [vmem:[#allocation2 + $0x50] sm:$0xff]
    %v318 = vld [vmem:[#allocation2 + $0x58] sm:$0xff]
    %v319 = vld [vmem:[#allocation2 + $0x60] sm:$0xff]
    %v320 = vld [vmem:[#allocation2 + $0x68] sm:$0xff]
    %v321 = vld [vmem:[#allocation2 + $0x70] sm:$0xff]
    %v322 = vld [vmem:[#allocation2 + $0x78] sm:$0xff]
    %323 = vmatprep.subr.mxu0 0.0
    %324 = vmatpush1.msra.mxu0 %v322
    %325 = vmatprep.subr.mxu0 0.0
    %326 = vmatpush1.msra.mxu0 %v321
    %327 = vmatprep.subr.mxu0 0.0
    %328 = vmatpush1.msra.mxu0 %v320
    %329 = vmatprep.subr.mxu0 0.0
    %330 = vmatpush1.msra.mxu0 %v319
    %331 = vmatprep.subr.mxu0 0.0
    %332 = vmatpush1.msra.mxu0 %v318
    %333 = vmatprep.subr.mxu0 0.0
    %334 = vmatpush1.msra.mxu0 %v317
    %335 = vmatprep.subr.mxu0 0.0
    %336 = vmatpush1.msra.mxu0 %v316
    %337 = vmatprep.subr.mxu0 0.0
    %338 = vmatpush1.msra.mxu0 %v315
    %339 = vmatprep.subr.mxu0 0.0
    %340 = vmatpush1.msra.mxu0 %v314
    %341 = vmatprep.subr.mxu0 0.0
    %342 = vmatpush1.msra.mxu0 %v313
    %343 = vmatprep.subr.mxu0 0.0
    %344 = vmatpush1.msra.mxu0 %v312
    %345 = vmatprep.subr.mxu0 0.0
    %346 = vmatpush1.msra.mxu0 %v311
    %347 = vmatprep.subr.mxu0 0.0
    %348 = vmatpush1.msra.mxu0 %v310
    %349 = vmatprep.subr.mxu0 0.0
    %350 = vmatpush1.msra.mxu0 %v309
    %351 = vmatprep.subr.mxu0 0.0
    %352 = vmatpush1.msra.mxu0 %v308
    %353 = vmatprep.subr.mxu0 0.0
    %354 = vmatpush1.msra.mxu0 %v307
    %355 = vmatprep.subr.mxu0 0.0
    %356 = vmatpush2.msra.mxu0 0.0
    %357 = vmatprep.subr.mxu0 0.0
    %358 = vmatpush2.msra.mxu0 0.0
    %359 = vmatprep.subr.mxu0 0.0
    %360 = vmatpush2.msra.mxu0 0.0
    %361 = vmatprep.subr.mxu0 0.0
    %362 = vmatpush2.msra.mxu0 0.0
    %363 = vmatprep.subr.mxu0 0.0
    %364 = vmatpush2.msra.mxu0 0.0
    %365 = vmatprep.subr.mxu0 0.0
    %366 = vmatpush2.msra.mxu0 0.0
    %367 = vmatprep.subr.mxu0 0.0
    %368 = vmatpush2.msra.mxu0 0.0
    %369 = vmatprep.subr.mxu0 0.0
    %370 = vmatpush2.msra.mxu0 0.0
    %371 = vmatprep.subr.mxu0 0.0
    %372 = vmatpush2.msra.mxu0 0.0
    %373 = vmatprep.subr.mxu0 0.0
    %374 = vmatpush2.msra.mxu0 0.0
    %375 = vmatprep.subr.mxu0 0.0
    %376 = vmatpush2.msra.mxu0 0.0
    %377 = vmatprep.subr.mxu0 0.0
    %378 = vmatpush2.msra.mxu0 0.0
    %379 = vmatprep.subr.mxu0 0.0
    %380 = vmatpush2.msra.mxu0 0.0
    %381 = vmatprep.subr.mxu0 0.0
    %382 = vmatpush2.msra.mxu0 0.0
    %383 = vmatprep.subr.mxu0 0.0
    %384 = vmatpush2.msra.mxu0 0.0
    %385 = vmatprep.subr.mxu0 0.0
    %386 = vmatpush2.msra.mxu0 0.0
    %387 = vmatprep.mubr.f32.mxu0 0.0
    %388 = vmatmul.mubr.f32.gmra.mxu0 %v165
    %v389 = vpop.f32.mrf.mxu0
    %v390 = vadd.f32 0.0, %v389
    %v391 = vpop.f32.mrf.mxu0
    %392 = vmatprep.mubr.f32.mxu0 0.0
    %393 = vmatmul.mubr.f32.gmra.mxu0 %v168
    %v394 = vpop.f32.mrf.mxu0
    %v395 = vadd.f32 0.0, %v394
    %v396 = vpop.f32.mrf.mxu0
    %397 = vmatprep.mubr.f32.mxu0 0.0
    %398 = vmatmul.mubr.f32.gmra.mxu0 %v173
    %v399 = vpop.f32.mrf.mxu0
    %v400 = vadd.f32 0.0, %v399
    %v401 = vpop.f32.mrf.mxu0
    %402 = vmatprep.mubr.f32.mxu0 0.0
    %403 = vmatmul.mubr.f32.gmra.mxu0 %v176
    %v404 = vpop.f32.mrf.mxu0
    %v405 = vadd.f32 0.0, %v404
    %v406 = vpop.f32.mrf.mxu0
    %407 = vmatprep.mubr.f32.mxu0 0.0
    %408 = vmatmul.mubr.f32.gmra.mxu0 %v181
    %v409 = vpop.f32.mrf.mxu0
    %v410 = vadd.f32 0.0, %v409
    %v411 = vpop.f32.mrf.mxu0
    %412 = vmatprep.mubr.f32.mxu0 0.0
    %413 = vmatmul.mubr.f32.gmra.mxu0 %v184
    %v414 = vpop.f32.mrf.mxu0
    %v415 = vadd.f32 0.0, %v414
    %v416 = vpop.f32.mrf.mxu0
    %417 = vmatprep.mubr.f32.mxu0 0.0
    %418 = vmatmul.mubr.f32.gmra.mxu0 %v189
    %v419 = vpop.f32.mrf.mxu0
    %v420 = vadd.f32 0.0, %v419
    %v421 = vpop.f32.mrf.mxu0
    %422 = vmatprep.mubr.f32.mxu0 0.0
    %423 = vmatmul.mubr.f32.gmra.mxu0 %v192
    %v424 = vpop.f32.mrf.mxu0
    %v425 = vadd.f32 0.0, %v424
    %v426 = vpop.f32.mrf.mxu0
    %427 = vmatprep.mubr.f32.mxu0 0.0
    %428 = vmatmul.mubr.f32.gmra.mxu0 %v197
    %v429 = vpop.f32.mrf.mxu0
    %v430 = vadd.f32 0.0, %v429
    %v431 = vpop.f32.mrf.mxu0
    %432 = vmatprep.mubr.f32.mxu0 0.0
    %433 = vmatmul.mubr.f32.gmra.mxu0 %v200
    %v434 = vpop.f32.mrf.mxu0
    %v435 = vadd.f32 0.0, %v434
    %v436 = vpop.f32.mrf.mxu0
    %437 = vmatprep.mubr.f32.mxu0 0.0
    %438 = vmatmul.mubr.f32.gmra.mxu0 %v205
    %v439 = vpop.f32.mrf.mxu0
    %v440 = vadd.f32 0.0, %v439
    %v441 = vpop.f32.mrf.mxu0
    %442 = vmatprep.mubr.f32.mxu0 0.0
    %443 = vmatmul.mubr.f32.gmra.mxu0 %v208
    %v444 = vpop.f32.mrf.mxu0
    %v445 = vadd.f32 0.0, %v444
    %v446 = vpop.f32.mrf.mxu0
    %447 = vmatprep.mubr.f32.mxu0 0.0
    %448 = vmatmul.mubr.f32.gmra.mxu0 %v213
    %v449 = vpop.f32.mrf.mxu0
    %v450 = vadd.f32 0.0, %v449
    %v451 = vpop.f32.mrf.mxu0
    %452 = vmatprep.mubr.f32.mxu0 0.0
    %453 = vmatmul.mubr.f32.gmra.mxu0 %v216
    %v454 = vpop.f32.mrf.mxu0
    %v455 = vadd.f32 0.0, %v454
    %v456 = vpop.f32.mrf.mxu0
    %457 = vmatprep.mubr.f32.mxu0 0.0
    %458 = vmatmul.mubr.f32.gmra.mxu0 %v221
    %v459 = vpop.f32.mrf.mxu0
    %v460 = vadd.f32 0.0, %v459
    %v461 = vpop.f32.mrf.mxu0
    %462 = vmatprep.mubr.f32.mxu0 0.0
    %463 = vmatmul.mubr.f32.gmra.mxu0 %v224
    %v464 = vpop.f32.mrf.mxu0
    %v465 = vadd.f32 0.0, %v464
    %v466 = vpop.f32.mrf.mxu0
    %467 = vdwg.mxu0
    %468 = vst [vmem:[#allocation6] sm:$0xff] %v390
    %469 = vst [vmem:[#allocation6 + $0x8] sm:$0xff] %v395
    %470 = vst [vmem:[#allocation6 + $0x10] sm:$0xff] %v400
    %471 = vst [vmem:[#allocation6 + $0x18] sm:$0xff] %v405
    %472 = vst [vmem:[#allocation6 + $0x20] sm:$0xff] %v410
    %473 = vst [vmem:[#allocation6 + $0x28] sm:$0xff] %v415
    %474 = vst [vmem:[#allocation6 + $0x30] sm:$0xff] %v420
    %475 = vst [vmem:[#allocation6 + $0x38] sm:$0xff] %v425
    %476 = vst [vmem:[#allocation6 + $0x40] sm:$0xff] %v430
    %477 = vst [vmem:[#allocation6 + $0x48] sm:$0xff] %v435
    %478 = vst [vmem:[#allocation6 + $0x50] sm:$0xff] %v440
    %479 = vst [vmem:[#allocation6 + $0x58] sm:$0xff] %v445
    %480 = vst [vmem:[#allocation6 + $0x60] sm:$0xff] %v450
    %481 = vst [vmem:[#allocation6 + $0x68] sm:$0xff] %v455
    %482 = vst [vmem:[#allocation6 + $0x70] sm:$0xff] %v460
    %483 = vst [vmem:[#allocation6 + $0x78] sm:$0xff] %v465
    // Predicated region
    $region18: #{tpu_custom_call.1} parent=1 // pred_check
      _
    $region19: #{tpu_custom_call.1} parent=1 // pred_check_branch
      %485 = sbr.rel (0) target = $region21
    $region20: #{tpu_custom_call.1} parent=1 // pred_region
      %s487 = ssub.s32 1024, 1024
      %488 = vsyncadd [#allocation4], %s487
      %s489 = sshll.u32 [#allocation5], 4
      %s490 = int_to_ptr.vmem [resolvable:$true] %s489
      %495 = dma.vmem_to_hbm [thread:$0]  %s490, 1024, %s3, [#allocation4], 64, 64, 4
    $region21: #{tpu_custom_call.1} parent=1 // pred_fallthru
      _
    // Predicated region
    $region22: #{tpu_custom_call.1} parent=1 // pred_check
      _
    $region23: #{tpu_custom_call.1} parent=1 // pred_check_branch
      %497 = sbr.rel (0) target = $region25
    $region24: #{tpu_custom_call.1} parent=1 // pred_region
      %s499 = ssub.s32 2048, 2048
      %500 = vsyncadd [#allocation7], %s499
      %s501 = sshll.u32 [#allocation6], 4
      %s502 = int_to_ptr.vmem [resolvable:$true] %s501
      %507 = dma.vmem_to_hbm [thread:$0]  %s502, 2048, %s4, [#allocation7], 128, 128, 8
    $region25: #{tpu_custom_call.1} parent=1 // pred_fallthru
      _
    // Predicated region
    $region26: #{tpu_custom_call.1} parent=1 // pred_check
      _
    $region27: #{tpu_custom_call.1} parent=1 // pred_check_branch
      %509 = sbr.rel (0) target = $region29
    $region28: #{tpu_custom_call.1} parent=1 // pred_region
      %510 = dma.done [#allocation4], 1024
    $region29: #{tpu_custom_call.1} parent=1 // pred_fallthru
      _
    // Predicated region
    $region30: #{tpu_custom_call.1} parent=1 // pred_check
      _
    $region31: #{tpu_custom_call.1} parent=1 // pred_check_branch
      %512 = sbr.rel (0) target = $region33
    $region32: #{tpu_custom_call.1} parent=1 // pred_region
      %513 = dma.done [#allocation7], 2048
    $region33: #{tpu_custom_call.1} parent=1 // pred_fallthru
      _
    %514 = vsyncpa [#allocation3], 1
    %515 = vsyncpa [#allocation4], 1
    %516 = vsyncpa [#allocation7], 1

</llo_original>
